<compile_context>
chip_gen: v7x
topology: tpu7x:2x2x1
jax: 0.10.0
libtpu: 0.0.40
codegen_flags: <defaults>
</compile_context>

<pallas_src>
from functools import partial

import numpy as np
import jax
import jax.numpy as jnp
from jax import lax
from jax.experimental import pallas as pl
from jax.experimental.pallas import tpu as pltpu

_VMEM_LIMIT = 32 * 1024 * 1024  # safe on v5e/v6e/v7x; raise toward 128MiB on v6e
                                # for 512-wide tiles, keep <= ~48MiB on v7x.


# ----------------------------------------------------------------------------
# Linear layer: y = x @ w + b   (w pre-transposed to (K, N) on the host)
# ----------------------------------------------------------------------------
def _linear_kernel(x_ref, w_ref, b_ref, o_ref, *, compute_dtype):
    x = x_ref[...].astype(compute_dtype)
    w = w_ref[...].astype(compute_dtype)
    acc = jnp.dot(x, w, preferred_element_type=jnp.float32)     # MXU, f32 accum
    o_ref[...] = (acc + b_ref[...]).astype(o_ref.dtype)


def pallas_linear(x2d, w, b, *, compute_dtype=jnp.float32, tm=512, tn=256):
    """(M, K) @ (K, N) + (1, N); grid over (M, N) tiles; K kept whole (small here)."""
    M, K = x2d.shape
    Kw, N = w.shape
    assert Kw == K
    TM = min(tm, M)
    TN = min(tn, N)
    # NOTE: when M % TM != 0 (or N % TN != 0) the padded rows/lanes of the last
    # block are computed on replicated data and masked at store time by Pallas.
    # Do NOT rely on them if this kernel is ever changed to accumulate in place.
    grid = (pl.cdiv(M, TM), pl.cdiv(N, TN))
    kernel = partial(_linear_kernel, compute_dtype=compute_dtype)
    return pl.pallas_call(
        kernel,
        out_shape=jax.ShapeDtypeStruct((M, N), x2d.dtype),
        grid=grid,
        in_specs=[
            pl.BlockSpec((TM, K), lambda i, j: (i, 0)),
            pl.BlockSpec((K, TN), lambda i, j: (0, j)),   # weight tile resident per j
            pl.BlockSpec((1, TN), lambda i, j: (0, j)),   # bias tile resident per j
        ],
        out_specs=pl.BlockSpec((TM, TN), lambda i, j: (i, j)),
        compiler_params=pltpu.CompilerParams(
            dimension_semantics=("parallel", "parallel"),
            vmem_limit_bytes=_VMEM_LIMIT),
    )(x2d, w, b)


# ----------------------------------------------------------------------------
# Flash-style topological attention
#   bias(16->1 via SMEM-scalar FMAs) + per-head online softmax(QK^T + bias) V
# ----------------------------------------------------------------------------
def _flash_topo_attn_kernel(tw_ref, tb_ref, q_ref, k_ref, v_ref, top_ref,
                            o_ref, m_ref, l_ref, acc_ref, *,
                            n_head, d_attn, compute_dtype):
    ki = pl.program_id(2)

    @pl.when(ki == 0)
    def _init():
        m_ref[...] = jnp.full(m_ref.shape, -jnp.inf, dtype=m_ref.dtype)
        l_ref[...] = jnp.zeros(l_ref.shape, dtype=l_ref.dtype)
        acc_ref[...] = jnp.zeros(acc_ref.shape, dtype=acc_ref.dtype)

    # Topological bias for this (q-tile, kv-tile): lane-dense (TQ, TK) slabs,
    # 16 unrolled full-lane VPU FMAs with scalar coefficients read from SMEM.
    n_top = top_ref.shape[1]
    bias = top_ref[0, 0].astype(jnp.float32) * tw_ref[0] + tb_ref[0]
    for i in range(1, n_top):
        bias = bias + top_ref[0, i].astype(jnp.float32) * tw_ref[i]

    # 1/sqrt(d_attn) is already folded into w_Q/b_Q (prepare_params).
    q = q_ref[0].astype(compute_dtype)   # (TQ, H*D)
    k = k_ref[0].astype(compute_dtype)   # (TK, H*D)
    v = v_ref[0].astype(compute_dtype)   # (TK, H*D)

    for h in range(n_head):              # unrolled; heads independent
        sl = slice(h * d_attn, (h + 1) * d_attn)
        # QK^T without transposing K: contract last axis against last axis.
        s = lax.dot_general(
            q[:, sl], k[:, sl],
            dimension_numbers=(((1,), (1,)), ((), ())),
            preferred_element_type=jnp.float32) + bias            # (TQ, TK) f32

        m_prev = m_ref[h]                                          # (TQ, 1)
        m_new = jnp.maximum(m_prev, jnp.max(s, axis=-1, keepdims=True))
        alpha = jnp.exp(m_prev - m_new)
        p = jnp.exp(s - m_new)
        l_ref[h] = alpha * l_ref[h] + jnp.sum(p, axis=-1, keepdims=True)
        acc_ref[h] = alpha * acc_ref[h] + jnp.dot(
            p.astype(compute_dtype), v[:, sl],
            preferred_element_type=jnp.float32)
        m_ref[h] = m_new

    @pl.when(ki == pl.num_programs(2) - 1)
    def _finalize():
        parts = []
        for h in range(n_head):
            denom = l_ref[h]
            inv = pl.reciprocal(denom, approx=True)       # EUP slot
            inv = inv * (2.0 - denom * inv)               # Newton step -> f32 accuracy
            parts.append(acc_ref[h] * inv)
        # Single lane-dense (TQ, H*D) store (no per-head masked partial stores).
        o_ref[0] = jnp.concatenate(parts, axis=-1).astype(o_ref.dtype)


def pallas_topo_attention(q, k, v, top_t, top_w, top_b, *, n_head, d_attn,
                          compute_dtype=jnp.float32, tq=256, tk=256):
    """q/k/v: (B, S, H*D), top_t: (B, 16, S, S) -> (B, S, H*D)."""
    B, S, HD = q.shape
    n_top = top_t.shape[1]
    TQ = min(tq, S)
    TK = min(tk, S)
    assert S % TQ == 0 and S % TK == 0, \
        "online softmax requires S divisible by the q/kv tile sizes"
    grid = (B, S // TQ, S // TK)
    kernel = partial(_flash_topo_attn_kernel, n_head=n_head, d_attn=d_attn,
                     compute_dtype=compute_dtype)
    return pl.pallas_call(
        kernel,
        out_shape=jax.ShapeDtypeStruct((B, S, HD), q.dtype),
        grid=grid,
        in_specs=[
            pl.BlockSpec(memory_space=pltpu.MemorySpace.SMEM),       # top_w (16,)
            pl.BlockSpec(memory_space=pltpu.MemorySpace.SMEM),       # top_b (1,)
            pl.BlockSpec((1, TQ, HD), lambda b, qi, ki: (b, qi, 0)),
            pl.BlockSpec((1, TK, HD), lambda b, qi, ki: (b, ki, 0)),
            pl.BlockSpec((1, TK, HD), lambda b, qi, ki: (b, ki, 0)),
            pl.BlockSpec((1, n_top, TQ, TK), lambda b, qi, ki: (b, 0, qi, ki)),
        ],
        out_specs=pl.BlockSpec((1, TQ, HD), lambda b, qi, ki: (b, qi, 0)),
        scratch_shapes=[
            pltpu.VMEM((n_head, TQ, 1), jnp.float32),       # running max m
            pltpu.VMEM((n_head, TQ, 1), jnp.float32),       # running sum l
            pltpu.VMEM((n_head, TQ, d_attn), jnp.float32),  # output accumulator
        ],
        compiler_params=pltpu.CompilerParams(
            dimension_semantics=("parallel", "parallel", "arbitrary"),
            vmem_limit_bytes=_VMEM_LIMIT),
    )(top_w, top_b, q, k, v, top_t)


# ----------------------------------------------------------------------------
# Parameters
# ----------------------------------------------------------------------------
def init_params(key, n_head, d_attn, d_model):
    """torch.nn.Linear-style init: U(-1/sqrt(fan_in), 1/sqrt(fan_in)), (out,in) layout."""
    def linear(key, out_f, in_f):
        kw, kb = jax.random.split(key)
        bound = 1.0 / np.sqrt(in_f)
        w = jax.random.uniform(kw, (out_f, in_f), jnp.float32, -bound, bound)
        b = jax.random.uniform(kb, (out_f,), jnp.float32, -bound, bound)
        return w, b

    keys = jax.random.split(key, 5)
    top_w, top_b = linear(keys[0], 1, 16)
    wq_w, wq_b = linear(keys[1], d_attn * n_head, d_model)
    wk_w, wk_b = linear(keys[2], d_attn * n_head, d_model)
    wv_w, wv_b = linear(keys[3], d_attn * n_head, d_model)
    wo_w, wo_b = linear(keys[4], d_model, n_head * d_attn)
    return dict(top_w=top_w, top_b=top_b,
                wq_w=wq_w, wq_b=wq_b, wk_w=wk_w, wk_b=wk_b,
                wv_w=wv_w, wv_b=wv_b, wo_w=wo_w, wo_b=wo_b)


def prepare_params(raw, *, d_attn):
    """One-time host-side prep: bake 1/sqrt(d_attn) into w_Q/b_Q, transpose all
    linear weights to (K, N) so the MXU contracts the RHS sublane axis."""
    scale = 1.0 / np.sqrt(d_attn)
    return dict(
        wq_w=(raw["wq_w"] * scale).T, wq_b=(raw["wq_b"] * scale).reshape(1, -1),
        wk_w=raw["wk_w"].T, wk_b=raw["wk_b"].reshape(1, -1),
        wv_w=raw["wv_w"].T, wv_b=raw["wv_b"].reshape(1, -1),
        wo_w=raw["wo_w"].T, wo_b=raw["wo_b"].reshape(1, -1),
        top_w=raw["top_w"].reshape(16),
        top_b=raw["top_b"].reshape(1),
    )


# ----------------------------------------------------------------------------
# Module forward
# ----------------------------------------------------------------------------
def multi_head_topological_attention(p, x, top, *, n_head, d_attn,
                                     compute_dtype=jnp.bfloat16,
                                     tq=256, tk=256, tm=512, tn=256):
    """x: (B, S, d_model), top: (B, S, S, 16) -> (B, S, d_model)."""
    B, S, d_model = x.shape
    H, D = n_head, d_attn
    HD = H * D

    x2d = x.reshape(B * S, d_model)

    def proj(w, b):
        # (B, S, H*D): heads live on the lane axis -> no HBM-level head transpose.
        y = pallas_linear(x2d, w, b, compute_dtype=compute_dtype, tm=tm, tn=tn)
        return y.reshape(B, S, HD)

    Q = proj(p["wq_w"], p["wq_b"])
    K = proj(p["wk_w"], p["wk_b"])
    V = proj(p["wv_w"], p["wv_b"])

    # Re-layout top so the 16-wide reduce axis is NOT the lane axis; in-kernel
    # tiles are then lane-dense (TQ, TK) slabs.
    top_t = jnp.transpose(top, (0, 3, 1, 2))             # (B, 16, S, S)

    O = pallas_topo_attention(Q, K, V, top_t, p["top_w"], p["top_b"],
                              n_head=H, d_attn=D, compute_dtype=compute_dtype,
                              tq=tq, tk=tk)              # (B, S, H*D)

    out = pallas_linear(O.reshape(B * S, HD), p["wo_w"], p["wo_b"],
                        compute_dtype=compute_dtype, tm=tm, tn=tn)
    return out.reshape(B, S, d_model)


# ----------------------------------------------------------------------------
# Pure-JAX reference (correctness check; uses the raw PyTorch-layout params)
# ----------------------------------------------------------------------------
def reference(params, x, top, *, n_head, d_attn):
    B, S, d_model = x.shape
    H, D = n_head, d_attn
    top_out = jnp.einsum("bsti,oi->bsto", top, params["top_w"]) + params["top_b"]
    top_out = top_out[..., 0][:, None, :, :]              # (B, 1, S, S)

    def proj(w, b):
        y = jnp.einsum("bsm,nm->bsn", x, w) + b
        return y.reshape(B, S, H, D).transpose(0, 2, 1, 3)

    Q = proj(params["wq_w"], params["wq_b"])
    K = proj(params["wk_w"], params["wk_b"])
    V = proj(params["wv_w"], params["wv_b"])
    qk = jnp.einsum("bhqd,bhkd->bhqk", Q, K) / np.sqrt(D)
    score = jax.nn.softmax(qk + top_out, axis=-1)
    O = jnp.einsum("bhqk,bhkd->bhqd", score, V)
    O = O.transpose(0, 2, 1, 3).reshape(B, S, H * D)
    return jnp.einsum("bsn,mn->bsm", O, params["wo_w"]) + params["wo_b"]


# ----------------------------------------------------------------------------
if __name__ == "__main__":
    B, S, d_model = 2, 8, 32
    n_head, d_attn = 2, 8

    key = jax.random.PRNGKey(0)
    k_param, k_x, k_top = jax.random.split(key, 3)

    raw = init_params(k_param, n_head, d_attn, d_model)
    prepped = prepare_params(raw, d_attn=d_attn)

    x = jax.random.normal(k_x, (B, S, d_model), jnp.float32)
    top = jax.random.normal(k_top, (B, S, S, 16), jnp.float32)

    ref = reference(raw, x, top, n_head=n_head, d_attn=d_attn)

    # f32 MXU path: tight tolerance (softmax normalizer is Newton-refined).
    out_f32 = multi_head_topological_attention(
        prepped, x, top, n_head=n_head, d_attn=d_attn, compute_dtype=jnp.float32)
    out_f32 = jax.block_until_ready(out_f32)
    np.testing.assert_allclose(np.asarray(out_f32), np.asarray(ref),
                               atol=1e-4, rtol=1e-4)

    # bf16-operand MXU fast path (v6e/v7x): f32 accumulation, bf16-level tolerance.
    out_bf16 = multi_head_topological_attention(
        prepped, x, top, n_head=n_head, d_attn=d_attn, compute_dtype=jnp.bfloat16)
    out_bf16 = jax.block_until_ready(out_bf16)
    np.testing.assert_allclose(np.asarray(out_bf16), np.asarray(ref),
                               atol=2e-2, rtol=2e-2)

    print("KERNEL_OK")
</pallas_src>

<mosaic_0001>
module attributes {stable_mosaic.version = 11 : i64} {
  func.func @_linear_kernel(%arg0: i32, %arg1: i32, %arg2: memref<16x32xf32, #tpu.memory_space<vmem>>, %arg3: memref<32x16xf32, #tpu.memory_space<vmem>>, %arg4: memref<1x16xf32, #tpu.memory_space<vmem>>, %arg5: memref<16x16xf32, #tpu.memory_space<vmem>>) attributes {dimension_semantics = [#tpu.dimension_semantics<parallel>, #tpu.dimension_semantics<parallel>], iteration_bounds = array<i64: 1, 1>, scalar_prefetch = 0 : i64, scratch_operands = 0 : i64, tpu.core_type = #tpu.core_type<tc>, window_params = [{transform_indices = @transform_0, window_bounds = array<i64: 16, 32>}, {transform_indices = @transform_1, window_bounds = array<i64: 32, 16>}, {transform_indices = @transform_2, window_bounds = array<i64: 1, 16>}, {transform_indices = @transform_3, window_bounds = array<i64: 16, 16>}]} {
    %c0 = arith.constant 0 : index
    %c0_0 = arith.constant 0 : index
    %0 = vector.load %arg2[%c0, %c0_0] : memref<16x32xf32, #tpu.memory_space<vmem>>, vector<16x32xf32>
    %c0_1 = arith.constant 0 : index
    %c0_2 = arith.constant 0 : index
    %1 = vector.load %arg3[%c0_1, %c0_2] : memref<32x16xf32, #tpu.memory_space<vmem>>, vector<32x16xf32>
    %cst = arith.constant dense<0.000000e+00> : vector<16x16xf32>
    %2 = tpu.matmul %0, %1, %cst {dimension_numbers = #tpu.dot_dimension_numbers<[1], [0], [0], [1], [0, 0, 1, 1], [], []>} : vector<16x32xf32>, vector<32x16xf32>, vector<16x16xf32> -> vector<16x16xf32>
    %c0_3 = arith.constant 0 : index
    %c0_4 = arith.constant 0 : index
    %3 = vector.load %arg4[%c0_3, %c0_4] : memref<1x16xf32, #tpu.memory_space<vmem>>, vector<1x16xf32>
    %4 = vector.broadcast %3 : vector<1x16xf32> to vector<16x16xf32>
    %5 = arith.addf %2, %4 : vector<16x16xf32>
    %c0_5 = arith.constant 0 : index
    %c0_6 = arith.constant 0 : index
    %6 = vector.load %arg5[%c0_5, %c0_6] : memref<16x16xf32, #tpu.memory_space<vmem>>, vector<16x16xf32>
    tpu.vector_store %arg5[%c0_5, %c0_6], %5 {strides = array<i32>} : memref<16x16xf32, #tpu.memory_space<vmem>>, vector<16x16xf32>,
    return
  }
  func.func @transform_0(%arg0: i32, %arg1: i32) -> (i32, i32) {
    %c0_i32 = arith.constant 0 : i32
    %c0_i32_0 = arith.constant 0 : i32
    return %arg0, %c0_i32 : i32, i32
  }
  func.func @transform_1(%arg0: i32, %arg1: i32) -> (i32, i32) {
    %c0_i32 = arith.constant 0 : i32
    %c0_i32_0 = arith.constant 0 : i32
    return %c0_i32, %arg1 : i32, i32
  }
  func.func @transform_2(%arg0: i32, %arg1: i32) -> (i32, i32) {
    %c0_i32 = arith.constant 0 : i32
    %c0_i32_0 = arith.constant 0 : i32
    return %c0_i32, %arg1 : i32, i32
  }
  func.func @transform_3(%arg0: i32, %arg1: i32) -> (i32, i32) {
    %c0_i32 = arith.constant 0 : i32
    return %arg0, %arg1 : i32, i32
  }
}

</mosaic_0001>

<llo_original>
// kernel: tpu_custom_call.1
$region0: #{tpu_custom_call.1}
  #allocation0 [shape = 'u32[]', space=smem, size = 0x4, offset = 0x4, fixed_abs, tag = 'smem constant byte address 0x4 - core index']
  #allocation1 [shape = 'u32[144,128]{1,0:T(1,128)}', space=vmem, size = 0x12000, scoped, tag = 'internal scratch']
  %s0 = inlined_call_operand.vmem [shape: f32[16,32], index: 0, kind: input, shape index: {}]
  %s1 = inlined_call_operand.vmem [shape: f32[32,16], index: 1, kind: input, shape index: {}]
  %s2 = inlined_call_operand.vmem [shape: f32[1,16], index: 2, kind: input, shape index: {}]
  %s3 = inlined_call_operand.hbm [shape: f32[16,16], index: 3, kind: output, shape index: {}]
  %s4 = sld [smem:[#allocation0]]
  $region22: #{tpu_custom_call.1} parent=0
    _
  %s6 = ssub.s32 1, %s4
  %s7 = scalar_select 0, %s6, %s4
  $region1: #{tpu_custom_call.1} parent=0
    #allocation2 [shape = 'u8[8192]{0}', space=vmem, size = 0x2000, scoped, tag = 'output window, operand 0, single buffered']
    #allocation3 [shape = 's32[1]{0}', space=sflag, size = 0x4, scoped, tag = 'scoped memory for tpu_custom_call.1']
    %8 = vsyncpa [#allocation3], 0
    // Predicated region
    $region2: #{tpu_custom_call.1} parent=1 // pred_check
      _
    $region3: #{tpu_custom_call.1} parent=1 // pred_check_branch
      %10 = sbr.rel (0) target = $region5
    $region4: #{tpu_custom_call.1} parent=1 // pred_region
      _
    $region5: #{tpu_custom_call.1} parent=1 // pred_fallthru
      _
    // Predicated region
    $region6: #{tpu_custom_call.1} parent=1 // pred_check
      _
    $region7: #{tpu_custom_call.1} parent=1 // pred_check_branch
      %12 = sbr.rel (0) target = $region9
    $region8: #{tpu_custom_call.1} parent=1 // pred_region
      _
    $region9: #{tpu_custom_call.1} parent=1 // pred_fallthru
      _
    // Predicated region
    $region10: #{tpu_custom_call.1} parent=1 // pred_check
      _
    $region11: #{tpu_custom_call.1} parent=1 // pred_check_branch
      %14 = sbr.rel (0) target = $region13
    $region12: #{tpu_custom_call.1} parent=1 // pred_region
      _
    $region13: #{tpu_custom_call.1} parent=1 // pred_fallthru
      _
    %v15 = vld [vmem:[%s0] sm:$0xff]
    %v16 = vld [vmem:[%s0 + $0x8] sm:$0xff]
    %v17 = vld [vmem:[%s1] sm:$0xff]
    %v18 = vld [vmem:[%s1 + $0x8] sm:$0xff]
    %v19 = vld [vmem:[%s1 + $0x10] sm:$0xff]
    %v20 = vld [vmem:[%s1 + $0x18] sm:$0xff]
    %v21 = vld [vmem:[%s2] sm:$0x1]
    %v23 = vlaneseq
    %v24 = vshrl.u32 %v23, 7
    %v25 = vsub.s32 0, %v24
    %v26 = vrot.slane %v21, %v25
    %vm28 = vcmask 261120
    %v30 = vsel %vm28, %v15, 0
    %v33 = vsel %vm28, %v16, 0
    %35 = vmatprep.subr.mxu0 0.0
    %36 = vmatpush1.msra.mxu0 %v17
    %37 = vmatprep.subr.mxu0 0.0
    %38 = vmatpush1.msra.mxu0 %v18
    %39 = vmatprep.subr.mxu0 0.0
    %40 = vmatpush1.msra.mxu0 %v19
    %41 = vmatprep.subr.mxu0 0.0
    %42 = vmatpush1.msra.mxu0 %v20
    %43 = vmatprep.subr.mxu0 0.0
    %44 = vmatpush1.msra.mxu0 0.0
    %45 = vmatprep.subr.mxu0 0.0
    %46 = vmatpush1.msra.mxu0 0.0
    %47 = vmatprep.subr.mxu0 0.0
    %48 = vmatpush1.msra.mxu0 0.0
    %49 = vmatprep.subr.mxu0 0.0
    %50 = vmatpush1.msra.mxu0 0.0
    %51 = vmatprep.subr.mxu0 0.0
    %52 = vmatpush1.msra.mxu0 0.0
    %53 = vmatprep.subr.mxu0 0.0
    %54 = vmatpush1.msra.mxu0 0.0
    %55 = vmatprep.subr.mxu0 0.0
    %56 = vmatpush1.msra.mxu0 0.0
    %57 = vmatprep.subr.mxu0 0.0
    %58 = vmatpush1.msra.mxu0 0.0
    %59 = vmatprep.subr.mxu0 0.0
    %60 = vmatpush1.msra.mxu0 0.0
    %61 = vmatprep.subr.mxu0 0.0
    %62 = vmatpush1.msra.mxu0 0.0
    %63 = vmatprep.subr.mxu0 0.0
    %64 = vmatpush1.msra.mxu0 0.0
    %65 = vmatprep.subr.mxu0 0.0
    %66 = vmatpush1.msra.mxu0 0.0
    %67 = vmatprep.subr.mxu0 0.0
    %68 = vmatpush1.msra.mxu0 0.0
    %69 = vmatprep.subr.mxu0 0.0
    %70 = vmatpush1.msra.mxu0 0.0
    %71 = vmatprep.subr.mxu0 0.0
    %72 = vmatpush1.msra.mxu0 0.0
    %73 = vmatprep.subr.mxu0 0.0
    %74 = vmatpush1.msra.mxu0 0.0
    %75 = vmatprep.subr.mxu0 0.0
    %76 = vmatpush1.msra.mxu0 0.0
    %77 = vmatprep.subr.mxu0 0.0
    %78 = vmatpush1.msra.mxu0 0.0
    %79 = vmatprep.subr.mxu0 0.0
    %80 = vmatpush1.msra.mxu0 0.0
    %81 = vmatprep.subr.mxu0 0.0
    %82 = vmatpush1.msra.mxu0 0.0
    %83 = vmatprep.subr.mxu0 0.0
    %84 = vmatpush1.msra.mxu0 0.0
    %85 = vmatprep.subr.mxu0 0.0
    %86 = vmatpush1.msra.mxu0 0.0
    %87 = vmatprep.subr.mxu0 0.0
    %88 = vmatpush1.msra.mxu0 0.0
    %89 = vmatprep.subr.mxu0 0.0
    %90 = vmatpush1.msra.mxu0 0.0
    %91 = vmatprep.subr.mxu0 0.0
    %92 = vmatpush1.msra.mxu0 0.0
    %93 = vmatprep.subr.mxu0 0.0
    %94 = vmatpush1.msra.mxu0 0.0
    %95 = vmatprep.subr.mxu0 0.0
    %96 = vmatpush1.msra.mxu0 0.0
    %97 = vmatprep.subr.mxu0 0.0
    %98 = vmatpush1.msra.mxu0 0.0
    %99 = vmatprep.mubr.f32.mxu0 0.0
    %100 = vmatmul.mubr.f32.gmra.mrb[0].mxu0 %v30
    %v101 = vpop.f32.mrb[0].mxu0
    %v102 = vadd.f32 %v26, %v101
    %v103 = vpop.f32.mrb[0].mxu0
    %104 = vmatprep.mubr.f32.mxu0 0.0
    %105 = vmatmul.mubr.f32.gmra.mrb[0].mxu0 %v33
    %v106 = vpop.f32.mrb[0].mxu0
    %v107 = vadd.f32 %v26, %v106
    %v108 = vpop.f32.mrb[0].mxu0
    %109 = vdwg.mxu0
    %vm110 = vcmask 130048
    %111 = vst.msk [vmem:[#allocation2] sm:$0xff] %vm110, %v102
    %112 = vst.msk [vmem:[#allocation2 + $0x8] sm:$0xff] %vm110, %v107
    // Predicated region
    $region14: #{tpu_custom_call.1} parent=1 // pred_check
      _
    $region15: #{tpu_custom_call.1} parent=1 // pred_check_branch
      %114 = sbr.rel (0) target = $region17
    $region16: #{tpu_custom_call.1} parent=1 // pred_region
      %s116 = ssub.s32 256, 256
      %117 = vsyncadd [#allocation3], %s116
      %s118 = sshll.u32 [#allocation2], 4
      %s119 = int_to_ptr.vmem [resolvable:$true] %s118
      %124 = dma.vmem_to_hbm [thread:$0]  %s119, 256, %s3, [#allocation3], 128, 128, 8
    $region17: #{tpu_custom_call.1} parent=1 // pred_fallthru
      _
    // Predicated region
    $region18: #{tpu_custom_call.1} parent=1 // pred_check
      _
    $region19: #{tpu_custom_call.1} parent=1 // pred_check_branch
      %126 = sbr.rel (0) target = $region21
    $region20: #{tpu_custom_call.1} parent=1 // pred_region
      %127 = dma.done [#allocation3], 256
    $region21: #{tpu_custom_call.1} parent=1 // pred_fallthru
      _
    %128 = vsyncpa [#allocation3], 1

</llo_original>
